<compile_context>
chip_gen: v7x
topology: tpu7x:2x2x1
jax: 0.10.0
libtpu: 0.0.40
codegen_flags: <defaults>
</compile_context>

<pallas_src>
import numpy as np
import jax
import jax.numpy as jnp
from jax.experimental import pallas as pl
from jax.experimental.pallas import tpu as pltpu


def _odd_even_low_freq_indices(sh_degree):
    """Mirror the numpy index construction from the PyTorch module."""
    high_freq_degree = sh_degree / 2
    n_range_full_low = np.arange(0, high_freq_degree + 1, dtype=int)
    n_list_full_low = np.repeat(n_range_full_low, n_range_full_low * 2 + 1)
    odd_index_low_freq = np.where(n_list_full_low % 2 != 0)[0]
    even_index_freq = np.where(n_list_full_low % 2 == 0)[0]
    return odd_index_low_freq, even_index_freq


def _sublane_multiple(dtype):
    itemsize = jnp.dtype(dtype).itemsize
    return max(8, 8 * (4 // max(1, itemsize)))   # 8 f32, 16 bf16, 32 int8/fp8


def _loss_kernel(x_ref, w_ref, o_ref):
    # x_ref: (1, R, L)  input rows (native dtype), innermost Y*Z voxels on lanes
    # w_ref: (R, 1)     f32 per-row fused weights (+1/n_even, -1/n_odd, 0=dead)
    # o_ref: (1, 1, L)  f32 per-(bc, row-tile) partial sums (one value per lane)
    ax = jnp.abs(x_ref[...])                 # abs in native dtype (exact for bf16)
    y = ax * w_ref[...]                      # promotes to f32; dead rows weight 0
    o_ref[...] = jnp.sum(y, axis=1, keepdims=True)


def loss_oddsensitive(fodf_shc, sh_degree, norm="L1", *, row_tile=None,
                      vmem_budget_bytes=6 * 1024 * 1024):
    """Odd-sensitive L1 loss; returns a scalar f32 (matches the PyTorch forward)."""
    if norm != "L1":
        raise NotImplementedError("Expected L1 but got {}".format(norm))

    B, C, n_coeff, X, Y, Z = fodf_shc.shape
    odd_idx, even_idx = _odd_even_low_freq_indices(sh_degree)
    n_low = len(odd_idx) + len(even_idx)
    if n_coeff < n_low:
        raise ValueError("fodf_shc has fewer coefficients than the low-frequency "
                         "set implied by sh_degree")

    BC = B * C
    L = Y * Z                      # lane axis
    total_rows = n_coeff * X       # sublane axis: (coefficient, x) pairs
    need_rows = n_low * X          # only the low-frequency rows are ever read

    # Contiguous reshape only -- no transpose / relayout pass through HBM.
    x3 = fodf_shc.reshape(BC, total_rows, L)

    itemsize = jnp.dtype(fodf_shc.dtype).itemsize
    sub = _sublane_multiple(fodf_shc.dtype)

    # Row tile sized so one (R, L) input buffer is ~vmem_budget_bytes (2 buffers
    # for double-buffering).  Clamp to the padded useful row count.
    if row_tile is None:
        r_budget = max(sub, (vmem_budget_bytes // (L * itemsize)) // sub * sub)
    else:
        r_budget = max(sub, (int(row_tile) // sub) * sub)
    R = min(r_budget, ((need_rows + sub - 1) // sub) * sub)
    n_row_tiles = -(-need_rows // R)
    if R >= total_rows or n_row_tiles * R > total_rows:
        # Single full-height block: always a legal block shape and in-bounds.
        R = total_rows
        n_row_tiles = 1

    # Per-row fused weights: +1/n_even for even-degree low-frequency rows,
    # -1/n_odd for odd-degree rows, 0 for high-frequency / padded rows.  The
    # final 1/(B*C*X*Y*Z) scaling and the outer |.| happen in the epilogue.
    # TODO(synk): if either parity group is empty (sh_degree < 2) the PyTorch
    # reference produces NaN (mean of empty tensor); we use 0 instead.
    even_scale = 1.0 / float(len(even_idx)) if len(even_idx) else 0.0
    odd_scale = 1.0 / float(len(odd_idx)) if len(odd_idx) else 0.0
    w_rows = n_row_tiles * R
    coeff_of_row = np.arange(w_rows) // X
    w = np.zeros((w_rows, 1), np.float32)
    w[np.isin(coeff_of_row, even_idx), 0] = even_scale
    w[np.isin(coeff_of_row, odd_idx), 0] = -odd_scale

    out_rows = BC * n_row_tiles
    partials = pl.pallas_call(
        _loss_kernel,
        out_shape=jax.ShapeDtypeStruct((out_rows, 1, L), jnp.float32),
        grid=(BC, n_row_tiles),
        in_specs=[
            pl.BlockSpec((1, R, L), lambda bc, t: (bc, t, 0)),
            pl.BlockSpec((R, 1), lambda bc, t: (t, 0)),
        ],
        # Every grid step writes its own partial block -> no revisits, so both
        # grid axes can be "parallel" (feeds v7x's second TensorCore even when
        # BC is small); the epilogue sums the partials.
        out_specs=pl.BlockSpec((1, 1, L),
                               lambda bc, t: (bc * n_row_tiles + t, 0, 0)),
        compiler_params=pltpu.CompilerParams(
            dimension_semantics=("parallel", "parallel"),
            vmem_limit_bytes=32 * 1024 * 1024),
    )(x3, jnp.asarray(w))

    # Tiny epilogue: combine partials, normalise, apply the outer |.|.
    total = jnp.sum(partials)
    return jnp.abs(total) * (1.0 / float(BC * X * Y * Z))


def _reference(fodf_shc, sh_degree):
    """Pure-JAX reference mirroring the PyTorch forward exactly (f32 math)."""
    odd_idx, even_idx = _odd_even_low_freq_indices(sh_degree)
    fo = fodf_shc.astype(jnp.float32)
    odd_part = fo[:, :, odd_idx, :, :, :]
    even_part = fo[:, :, even_idx, :, :, :]
    loss_low = jnp.abs(jnp.mean(jnp.abs(even_part)) - jnp.mean(jnp.abs(odd_part)))
    return jnp.mean(loss_low)


if __name__ == "__main__":
    sh_degree = 4
    n_coeff = (sh_degree + 1) ** 2          # 25 SH coefficients (degrees 0..4)
    B, C, X, Y, Z = 2, 2, 8, 8, 9           # 9 low-freq coeffs -> 72 useful rows

    key = jax.random.PRNGKey(0)
    fodf_shc = jax.random.normal(key, (B, C, n_coeff, X, Y, Z), dtype=jnp.float32)

    ref = jax.block_until_ready(_reference(fodf_shc, sh_degree))

    # Default (auto-sized) tile: one (72, 72) block per (b*c).
    loss_auto = jax.block_until_ready(loss_oddsensitive(fodf_shc, sh_degree))
    np.testing.assert_allclose(np.asarray(loss_auto), np.asarray(ref),
                               rtol=1e-4, atol=1e-5)

    # Forced multi-tile path: 5 row-tiles of 16 per (b*c), last one zero-padded.
    loss_tiled = jax.block_until_ready(
        loss_oddsensitive(fodf_shc, sh_degree, row_tile=16))
    np.testing.assert_allclose(np.asarray(loss_tiled), np.asarray(ref),
                               rtol=1e-4, atol=1e-5)

    # bf16 inputs: abs stays in bf16 (exact), accumulation in f32.
    fodf_bf16 = fodf_shc.astype(jnp.bfloat16)
    ref_bf16 = jax.block_until_ready(_reference(fodf_bf16, sh_degree))
    loss_bf16 = jax.block_until_ready(loss_oddsensitive(fodf_bf16, sh_degree))
    np.testing.assert_allclose(np.asarray(loss_bf16), np.asarray(ref_bf16),
                               rtol=1e-3, atol=1e-4)

    print("KERNEL_OK")
</pallas_src>

<mosaic_0001>
module attributes {stable_mosaic.version = 11 : i64} {
  func.func @_loss_kernel(%arg0: i32, %arg1: i32, %arg2: memref<1x72x72xf32, #tpu.memory_space<vmem>>, %arg3: memref<72x1xf32, #tpu.memory_space<vmem>>, %arg4: memref<1x1x72xf32, #tpu.memory_space<vmem>>) attributes {dimension_semantics = [#tpu.dimension_semantics<parallel>, #tpu.dimension_semantics<parallel>], iteration_bounds = array<i64: 4, 1>, scalar_prefetch = 0 : i64, scratch_operands = 0 : i64, tpu.core_type = #tpu.core_type<tc>, window_params = [{transform_indices = @transform_0, window_bounds = array<i64: 1, 72, 72>}, {transform_indices = @transform_1, window_bounds = array<i64: 72, 1>}, {transform_indices = @transform_2, window_bounds = array<i64: 1, 1, 72>}]} {
    %c0 = arith.constant 0 : index
    %c0_0 = arith.constant 0 : index
    %c0_1 = arith.constant 0 : index
    %0 = vector.load %arg2[%c0, %c0_0, %c0_1] : memref<1x72x72xf32, #tpu.memory_space<vmem>>, vector<1x72x72xf32>
    %1 = math.absf %0 : vector<1x72x72xf32>
    %c0_2 = arith.constant 0 : index
    %c0_3 = arith.constant 0 : index
    %2 = vector.load %arg3[%c0_2, %c0_3] : memref<72x1xf32, #tpu.memory_space<vmem>>, vector<72x1xf32>
    %3 = vector.shape_cast %2 : vector<72x1xf32> to vector<1x72x1xf32>
    %4 = vector.broadcast %3 : vector<1x72x1xf32> to vector<1x72x72xf32>
    %5 = arith.mulf %1, %4 : vector<1x72x72xf32>
    %cst = arith.constant dense<0.000000e+00> : vector<1x72xf32>
    %6 = vector.multi_reduction <add>, %5, %cst [1] : vector<1x72x72xf32> to vector<1x72xf32>
    %7 = vector.shape_cast %6 : vector<1x72xf32> to vector<1x1x72xf32>
    %c0_4 = arith.constant 0 : index
    %c0_5 = arith.constant 0 : index
    %c0_6 = arith.constant 0 : index
    %8 = vector.load %arg4[%c0_4, %c0_5, %c0_6] : memref<1x1x72xf32, #tpu.memory_space<vmem>>, vector<1x1x72xf32>
    tpu.vector_store %arg4[%c0_4, %c0_5, %c0_6], %7 {strides = array<i32>} : memref<1x1x72xf32, #tpu.memory_space<vmem>>, vector<1x1x72xf32>,
    return
  }
  func.func @transform_0(%arg0: i32, %arg1: i32) -> (i32, i32, i32) {
    %c0_i32 = arith.constant 0 : i32
    %c0_i32_0 = arith.constant 0 : i32
    return %arg0, %arg1, %c0_i32 : i32, i32, i32
  }
  func.func @transform_1(%arg0: i32, %arg1: i32) -> (i32, i32) {
    %c0_i32 = arith.constant 0 : i32
    %c0_i32_0 = arith.constant 0 : i32
    return %arg1, %c0_i32 : i32, i32
  }
  func.func @transform_2(%arg0: i32, %arg1: i32) -> (i32, i32, i32) {
    %c1_i32 = arith.constant 1 : i32
    %0 = arith.muli %arg0, %c1_i32 : i32
    %1 = arith.addi %0, %arg1 : i32
    %c0_i32 = arith.constant 0 : i32
    %c0_i32_0 = arith.constant 0 : i32
    %c0_i32_1 = arith.constant 0 : i32
    return %1, %c0_i32, %c0_i32_0 : i32, i32, i32
  }
}

</mosaic_0001>

<llo_original>
// kernel: tpu_custom_call.1
$region0: #{tpu_custom_call.1}
  #allocation0 [shape = 'u32[]', space=smem, size = 0x4, offset = 0x4, fixed_abs, tag = 'smem constant byte address 0x4 - core index']
  #allocation1 [shape = 'u32[144,128]{1,0:T(1,128)}', space=vmem, size = 0x12000, scoped, tag = 'internal scratch']
  %s0 = inlined_call_operand.vmem [shape: f32[4,200,72], index: 0, kind: input, shape index: {}]
  %s1 = inlined_call_operand.vmem [shape: f32[72,1], index: 1, kind: input, shape index: {}]
  %s2 = inlined_call_operand.hbm [shape: f32[4,1,72], index: 2, kind: output, shape index: {}]
  %s3 = sld [smem:[#allocation0]]
  $region41: #{tpu_custom_call.1} parent=0
    _
  %s5 = ssub.s32 1, %s3
  %s6 = scalar_select 0, %s5, %s3
  $region1: #{tpu_custom_call.1} parent=0
    #allocation2 [shape = 'u8[1024]{0}', space=vmem, size = 0x400, scoped, tag = 'output window, operand 0']
    #allocation3 [shape = 's32[2]{0}', space=sflag, size = 0x8, scoped, tag = 'scoped memory for tpu_custom_call.1']
    %7 = vsyncpa [#allocation3], 0
    %s8 = scalar_lea.sflag [#allocation3], 1
    %9 = vsyncpa %s8, 0
    loop: start=0, step=1, limit=6
    $region2: #{tpu_custom_call.1} parent=1 // loop_pre_header
      _
    $region3: #{tpu_custom_call.1} parent=1 // loop_header
      %s11 = sphi 0, %s15
      %p12 = scmp.ge.s32.totalorder %s11, 6
      %s18 = sphi 0, %s30
      %s19 = sphi 0, %s26
      %s20 = sphi 0, %s18
      %s21 = sphi 0, %s19
      %s22 = sphi 0, %s20
      %s23 = sphi 0, %s21
      %s35 = sphi 0, %s37
      %s38 = sphi 0, %s35
      %s39 = sphi 0, %s38
      %s55 = sphi 0, %s39
      %s61 = sphi 0, %s63
      %s64 = sphi 0, %s61
      %s65 = sphi 0, %s64
      %s81 = sphi 0, %s65
      %s89 = sphi 0, %s91
      %s92 = sphi 0, %s89
      %s93 = sphi 0, %s92
      %s109 = sphi 0, %s93
    $region4: #{tpu_custom_call.1} parent=1 // loop_header_branch
      %14 = sbr.rel (%p12) target = $region8
    $region5: #{tpu_custom_call.1} parent=1 // loop_body
      %s16 = ssub.s32 %s11, 1
      %s17 = ssub.s32 %s11, 2
      %s24 = sadd.s32 1, %s19
      %p25 = scmp.ge.s32.totalorder %s24, 1
      %s26 = scalar_select %p25, 0, %s24
      %s27 = sadd.s32 1, %s18
      %s28 = scalar_select %p25, %s27, %s18
      %p29 = scmp.ge.s32.totalorder %s28, 4
      %s30 = scalar_select %p29, 0, %s28
      %s31 = ssub.s32 %s18, %s30
      %s32 = ssub.s32 %s19, %s26
      %s33 = sor.u32 %s31, %s32
      %p34 = scmp.eq.s32.totalorder %s33, 0
      %s36 = sadd.s32 %s35, 1
      %s37 = scalar_select %p34, %s35, %s36
      %p40 = pneg %p34
      %p41 = scmp.eq.s32.totalorder %s11, 3
      %p42 = por %p40, %p41
      %p43 = scmp.ne.s32.totalorder %s35, %s38
      %p44 = scmp.eq.s32.totalorder %s11, 0
      %p45 = por %p43, %p44
      %p46 = scmp.ne.s32.totalorder %s35, %s38
      %p47 = scmp.eq.s32.totalorder %s16, 3
      %p48 = por %p46, %p47
      %p49 = scmp.ne.s32.totalorder %s38, %s39
      %p50 = scmp.eq.s32.totalorder %s16, 0
      %p51 = por %p49, %p50
      %p52 = scmp.ne.s32.totalorder %s38, %s39
      %p53 = scmp.eq.s32.totalorder %s17, 3
      %p54 = por %p52, %p53
      %p56 = scmp.ne.s32.totalorder %s39, %s55
      %p57 = scmp.eq.s32.totalorder %s17, 0
      %p58 = por %p56, %p57
      %s59 = ssub.s32 %s19, %s26
      %p60 = scmp.eq.s32.totalorder %s59, 0
      %s62 = sadd.s32 %s61, 1
      %s63 = scalar_select %p60, %s61, %s62
      %p66 = pneg %p60
      %p67 = scmp.eq.s32.totalorder %s11, 3
      %p68 = por %p66, %p67
      %p69 = scmp.ne.s32.totalorder %s61, %s64
      %p70 = scmp.eq.s32.totalorder %s11, 0
      %p71 = por %p69, %p70
      %p72 = scmp.ne.s32.totalorder %s61, %s64
      %p73 = scmp.eq.s32.totalorder %s16, 3
      %p74 = por %p72, %p73
      %p75 = scmp.ne.s32.totalorder %s64, %s65
      %p76 = scmp.eq.s32.totalorder %s16, 0
      %p77 = por %p75, %p76
      %p78 = scmp.ne.s32.totalorder %s64, %s65
      %p79 = scmp.eq.s32.totalorder %s17, 3
      %p80 = por %p78, %p79
      %p82 = scmp.ne.s32.totalorder %s65, %s81
      %p83 = scmp.eq.s32.totalorder %s17, 0
      %p84 = por %p82, %p83
      %s85 = sadd.s32 %s18, %s19
      %s86 = sadd.s32 %s30, %s26
      %s87 = ssub.s32 %s85, %s86
      %p88 = scmp.eq.s32.totalorder %s87, 0
      %s90 = sadd.s32 %s89, 1
      %s91 = scalar_select %p88, %s89, %s90
      %p94 = pneg %p88
      %p95 = scmp.eq.s32.totalorder %s11, 3
      %p96 = por %p94, %p95
      %p97 = scmp.ne.s32.totalorder %s89, %s92
      %p98 = scmp.eq.s32.totalorder %s11, 0
      %p99 = por %p97, %p98
      %p100 = scmp.ne.s32.totalorder %s89, %s92
      %p101 = scmp.eq.s32.totalorder %s16, 3
      %p102 = por %p100, %p101
      %p103 = scmp.ne.s32.totalorder %s92, %s93
      %p104 = scmp.eq.s32.totalorder %s16, 0
      %p105 = por %p103, %p104
      %p106 = scmp.ne.s32.totalorder %s92, %s93
      %p107 = scmp.eq.s32.totalorder %s17, 3
      %p108 = por %p106, %p107
      %p110 = scmp.ne.s32.totalorder %s93, %s109
      %p111 = scmp.eq.s32.totalorder %s17, 0
      %p112 = por %p110, %p111
      %p113 = scmp.le.s32.totalorder 1, %s11
      %p114 = scmp.lt.s32.totalorder %s11, 5
      %p115 = pnand %p113, %p114
      %p116 = pneg %p115
      // Predicated region
      $region9: #{tpu_custom_call.1} parent=5 // pred_check
        _
      $region10: #{tpu_custom_call.1} parent=5 // pred_check_branch
        %118 = sbr.rel (%p115) target = $region12
      $region11: #{tpu_custom_call.1} parent=5 // pred_region
        %s119 = ssub.s32 %s11, 1
        // Predicated region
        $region13: #{tpu_custom_call.1} parent=11 // pred_check
          %p120 = pneg %p77
        $region14: #{tpu_custom_call.1} parent=11 // pred_check_branch
          %122 = sbr.rel (%p120) target = $region16
        $region15: #{tpu_custom_call.1} parent=11 // pred_region
          %s123 = smul.u32 9, %s21
          %p124 = scmp.lt.s32.totalorder %s123, 8
          %s125 = scalar_select %p124, %s123, 8
          %s126 = smul.addr %s125, 8
          %s127 = scalar_lea.vmem %s1, %s126
          %s128 = smul.u32 9, %s21
        $region16: #{tpu_custom_call.1} parent=11 // pred_fallthru
          _
      $region12: #{tpu_custom_call.1} parent=5 // pred_fallthru
        _
      %p129 = scmp.lt.s32.totalorder %s11, 4
      // Predicated region
      $region17: #{tpu_custom_call.1} parent=5 // pred_check
        %p130 = pneg %p129
      $region18: #{tpu_custom_call.1} parent=5 // pred_check_branch
        %132 = sbr.rel (%p130) target = $region20
      $region19: #{tpu_custom_call.1} parent=5 // pred_region
        // Predicated region
        $region21: #{tpu_custom_call.1} parent=19 // pred_check
          %p133 = pneg %p45
        $region22: #{tpu_custom_call.1} parent=19 // pred_check_branch
          %135 = sbr.rel (%p133) target = $region24
        $region23: #{tpu_custom_call.1} parent=19 // pred_region
          %s136 = smul.u32 9, %s19
          %s137 = ssub.s32 25, %s136
          %p138 = scmp.lt.s32.totalorder %s137, 9
          %s139 = scalar_select %p138, %s137, 9
          %s140 = smul.u32 128, %s139
          %p141 = scmp.lt.s32.totalorder %s18, 3
          %s142 = scalar_select %p141, %s18, 3
          %p143 = scmp.lt.s32.totalorder %s136, 24
          %s144 = scalar_select %p143, %s136, 24
          %s145 = smul.addr %s142, 25
          %s146 = sadd.s32 %s144, %s145
          %s147 = smul.addr %s146, 8
          %s148 = scalar_lea.vmem %s0, %s147
          %s149 = smul.u32 9, %s19
          %s150 = ssub.s32 25, %s149
          %p151 = scmp.lt.s32.totalorder %s150, 9
          %s152 = scalar_select %p151, %s150, 9
          %s153 = smul.u32 128, %s152
        $region24: #{tpu_custom_call.1} parent=19 // pred_fallthru
          _
      $region20: #{tpu_custom_call.1} parent=5 // pred_fallthru
        _
      %p154 = scmp.le.s32.totalorder 1, %s11
      %p155 = scmp.lt.s32.totalorder %s11, 5
      %p156 = pnand %p154, %p155
      %p157 = pneg %p156
      // Predicated region
      $region25: #{tpu_custom_call.1} parent=5 // pred_check
        _
      $region26: #{tpu_custom_call.1} parent=5 // pred_check_branch
        %159 = sbr.rel (%p156) target = $region28
      $region27: #{tpu_custom_call.1} parent=5 // pred_region
        %s160 = ssub.s32 %s11, 1
        %s161 = smul.u32 9, %s21
        %s162 = ssub.s32 25, %s161
        %p163 = scmp.lt.s32.totalorder %s162, 9
        %s164 = scalar_select %p163, %s162, 9
        %s165 = smul.u32 128, %s164
        %p166 = scmp.lt.s32.totalorder %s20, 3
        %s167 = scalar_select %p166, %s20, 3
        %p168 = scmp.lt.s32.totalorder %s161, 24
        %s169 = scalar_select %p168, %s161, 24
        %s170 = smul.addr %s167, 25
        %s171 = sadd.s32 %s169, %s170
        %s172 = smul.addr %s171, 8
        %s173 = scalar_lea.vmem %s0, %s172
        %p174 = pneg %p51
        %p175 = pneg %p48
        %s176 = smul.u32 9, %s21
        %p177 = scmp.lt.s32.totalorder %s176, 8
        %s178 = scalar_select %p177, %s176, 8
        %s179 = smul.addr %s178, 8
        %s180 = scalar_lea.vmem %s1, %s179
        %p181 = pneg %p77
        %p182 = pneg %p74
        %p183 = pneg %p105
        %p184 = pneg %p102
        %s185 = sand.u32 %s92, 1
        %s186 = scalar_lea.sflag [#allocation3], %s185
        %s187 = sand.u32 %s92, 1
        %s188 = scalar_lea.vmem [#allocation2], %s187
        %s189 = smul.u32 9, %s21
        %s190 = ssub.s32 25, %s189
        %p191 = scmp.lt.s32.totalorder %s190, 9
        %s192 = scalar_select %p191, %s190, 9
        %s193 = smul.u32 128, %s192
        %p194 = scmp.lt.s32.totalorder %s20, 3
        %s195 = scalar_select %p194, %s20, 3
        %p196 = scmp.lt.s32.totalorder %s189, 24
        %s197 = scalar_select %p196, %s189, 24
        %s198 = smul.addr %s195, 25
        %s199 = sadd.s32 %s197, %s198
        %s200 = smul.addr %s199, 8
        %s201 = scalar_lea.vmem %s0, %s200
        %s202 = smul.u32 9, %s21
        %s203 = ssub.s32 25, %s202
        %p204 = scmp.lt.s32.totalorder %s203, 9
        %s205 = scalar_select %p204, %s203, 9
        %s206 = smul.u32 128, %s205
        %s207 = smul.u32 9, %s21
        %p208 = scmp.lt.s32.totalorder %s207, 8
        %s209 = scalar_select %p208, %s207, 8
        %s210 = smul.addr %s209, 8
        %s211 = scalar_lea.vmem %s1, %s210
        %s212 = smul.u32 9, %s21
        %s213 = sadd.s32 %s20, %s21
        %v214 = vld [vmem:[%s201] sm:$0xff]
        %v215 = vld [vmem:[%s201 + $0x8] sm:$0xff]
        %v216 = vld [vmem:[%s201 + $0x10] sm:$0xff]
        %v217 = vld [vmem:[%s201 + $0x18] sm:$0xff]
        %v218 = vld [vmem:[%s201 + $0x20] sm:$0xff]
        %v219 = vld [vmem:[%s201 + $0x28] sm:$0xff]
        %v220 = vld [vmem:[%s201 + $0x30] sm:$0xff]
        %v221 = vld [vmem:[%s201 + $0x38] sm:$0xff]
        %v222 = vld [vmem:[%s201 + $0x40] sm:$0xff]
        %v223 = vand.u32 2147483647, %v214
        %v224 = vand.u32 2147483647, %v215
        %v225 = vand.u32 2147483647, %v216
        %v226 = vand.u32 2147483647, %v217
        %v227 = vand.u32 2147483647, %v218
        %v228 = vand.u32 2147483647, %v219
        %v229 = vand.u32 2147483647, %v220
        %v230 = vand.u32 2147483647, %v221
        %v231 = vand.u32 2147483647, %v222
        %v232 = vld [vmem:[%s211] sm:$0xff]
        %v233 = vld [vmem:[%s211 + $0x8] sm:$0xff]
        %v234 = vld [vmem:[%s211 + $0x10] sm:$0xff]
        %v235 = vld [vmem:[%s211 + $0x18] sm:$0xff]
        %v236 = vld [vmem:[%s211 + $0x20] sm:$0xff]
        %v237 = vld [vmem:[%s211 + $0x28] sm:$0xff]
        %v238 = vld [vmem:[%s211 + $0x30] sm:$0xff]
        %v239 = vld [vmem:[%s211 + $0x38] sm:$0xff]
        %v240 = vld [vmem:[%s211 + $0x40] sm:$0xff]
        %242 = vset.pattern.permute.xlu0 0
        %243 = vperm.xlu0 %242, %v232
        %v244 = vpop.permute.xlu0 %243
        %247 = vset.pattern.permute.xlu0 0
        %248 = vperm.xlu0 %247, %v233
        %v249 = vpop.permute.xlu0 %248
        %252 = vset.pattern.permute.xlu0 0
        %253 = vperm.xlu0 %252, %v234
        %v254 = vpop.permute.xlu0 %253
        %257 = vset.pattern.permute.xlu0 0
        %258 = vperm.xlu0 %257, %v235
        %v259 = vpop.permute.xlu0 %258
        %262 = vset.pattern.permute.xlu0 0
        %263 = vperm.xlu0 %262, %v236
        %v264 = vpop.permute.xlu0 %263
        %267 = vset.pattern.permute.xlu0 0
        %268 = vperm.xlu0 %267, %v237
        %v269 = vpop.permute.xlu0 %268
        %272 = vset.pattern.permute.xlu0 0
        %273 = vperm.xlu0 %272, %v238
        %v274 = vpop.permute.xlu0 %273
        %277 = vset.pattern.permute.xlu0 0
        %278 = vperm.xlu0 %277, %v239
        %v279 = vpop.permute.xlu0 %278
        %282 = vset.pattern.permute.xlu0 0
        %283 = vperm.xlu0 %282, %v240
        %v284 = vpop.permute.xlu0 %283
        %v286 = vmul.f32 %v223, %v244
        %v287 = vmul.f32 %v224, %v249
        %v288 = vmul.f32 %v225, %v254
        %v289 = vmul.f32 %v226, %v259
        %v290 = vmul.f32 %v227, %v264
        %v291 = vmul.f32 %v228, %v269
        %v292 = vmul.f32 %v229, %v274
        %v293 = vmul.f32 %v230, %v279
        %v294 = vmul.f32 %v231, %v284
        %vm295 = vcmask 588800
        %v296 = vsel %vm295, %v286, 0.0
        %v297 = vsel %vm295, %v287, 0.0
        %v298 = vadd.f32 %v296, %v297
        %v299 = vsel %vm295, %v288, 0.0
        %v300 = vadd.f32 %v298, %v299
        %v301 = vsel %vm295, %v289, 0.0
        %v302 = vadd.f32 %v300, %v301
        %v303 = vsel %vm295, %v290, 0.0
        %v304 = vadd.f32 %v302, %v303
        %v305 = vsel %vm295, %v291, 0.0
        %v306 = vadd.f32 %v304, %v305
        %v307 = vsel %vm295, %v292, 0.0
        %v308 = vadd.f32 %v306, %v307
        %v309 = vsel %vm295, %v293, 0.0
        %v310 = vadd.f32 %v308, %v309
        %v311 = vsel %vm295, %v294, 0.0
        %v312 = vadd.f32 %v310, %v311
        %v313 = vrot.slane %v312, 4
        %v314 = vadd.f32 %v312, %v313
        %v315 = vrot.slane %v314, 2
        %v316 = vadd.f32 %v314, %v315
        %v317 = vrot.slane %v316, 1
        %v318 = vadd.f32 %v316, %v317
        %vm319 = vcmask 581632
        %320 = vst.msk [vmem:[%s188] sm:$0x1] %vm319, %v318
        %s321 = sand.u32 %s92, 1
        %s322 = scalar_lea.sflag [#allocation3], %s321
        %s323 = sand.u32 %s92, 1
        %s324 = scalar_lea.vmem [#allocation2], %s323
        // Predicated region
        $region29: #{tpu_custom_call.1} parent=27 // pred_check
          %p325 = pneg %p102
        $region30: #{tpu_custom_call.1} parent=27 // pred_check_branch
          %327 = sbr.rel (%p325) target = $region32
        $region31: #{tpu_custom_call.1} parent=27 // pred_region
          %s328 = sadd.s32 %s20, %s21
          %s330 = ssub.s32 16, 16
          %331 = vsyncadd %s322, %s330
          %s332 = smul.addr %s328, 16
          %s333 = scalar_lea.hbm %s2, %s332
          %s335 = sshll.u32 %s324, 4
          %s336 = int_to_ptr.vmem [resolvable:$true] %s335
          %338 = dma.vmem_to_hbm [thread:$0]  %s336, 16, %s333, %s322
        $region32: #{tpu_custom_call.1} parent=27 // pred_fallthru
          _
      $region28: #{tpu_custom_call.1} parent=5 // pred_fallthru
        _
      %p339 = scmp.le.s32.totalorder 2, %s11
      // Predicated region
      $region33: #{tpu_custom_call.1} parent=5 // pred_check
        %p340 = pneg %p339
      $region34: #{tpu_custom_call.1} parent=5 // pred_check_branch
        %342 = sbr.rel (%p340) target = $region36
      $region35: #{tpu_custom_call.1} parent=5 // pred_region
        %s343 = ssub.s32 %s11, 2
        // Predicated region
        $region37: #{tpu_custom_call.1} parent=35 // pred_check
          %p344 = pneg %p108
        $region38: #{tpu_custom_call.1} parent=35 // pred_check_branch
          %346 = sbr.rel (%p344) target = $region40
        $region39: #{tpu_custom_call.1} parent=35 // pred_region
          %s347 = sand.u32 %s93, 1
          %s348 = scalar_lea.sflag [#allocation3], %s347
          %s349 = sand.u32 %s93, 1
          %s350 = scalar_lea.vmem [#allocation2], %s349
          %351 = dma.done %s348, 16
        $region40: #{tpu_custom_call.1} parent=35 // pred_fallthru
          _
      $region36: #{tpu_custom_call.1} parent=5 // pred_fallthru
        _
    $region6: #{tpu_custom_call.1} parent=1 // loop_footer
      %s15 = sadd.s32 1, %s11
    $region7: #{tpu_custom_call.1} parent=1 // loop_footer_branch
      %10 = sbr.rel target = $region3
    $region8: #{tpu_custom_call.1} parent=1 // loop_exit
      _
    %352 = vsyncpa [#allocation3], 1
    %s353 = scalar_lea.sflag [#allocation3], 1
    %354 = vsyncpa %s353, 1

</llo_original>
